<compile_context>
chip_gen: v6e
topology: v6e:2x2x1
jax: 0.10.0
libtpu: 0.0.40
codegen_flags: <defaults>
</compile_context>

<pallas_src>
import functools
import math

import jax
import jax.numpy as jnp
from jax import lax
from jax.experimental import pallas as pl
from jax.experimental.pallas import tpu as pltpu


def _round_up(x, m):
    return (x + m - 1) // m * m


def _conv_bn_lrelu_kernel(x_ref, w_ref, b_ref, o_ref, *, NB, TH, HT, slope):
    """One grid step == (batch-group g, H-tile t).

    x_ref: (NB, Hp+2, Cwp)   bf16 whole padded per-batch images (lane-flattened rows)
    w_ref: (3*Cwp, WCp)      bf16 BN-scale-folded, kh-fused W-Toeplitz weights
    b_ref: (1, WCp)          f32 folded BN bias, tiled over W
    o_ref: (NB, TH, WCp)     output tile (lane-dense)
    """
    if HT == 1:
        r0 = 0  # tiny-H fast path: fully static slices
    else:
        r0 = pl.multiple_of(pl.program_id(1) * TH, TH)  # tile-aligned dynamic start

    rows = []
    for b in range(NB):  # static unroll: stack NB batches into the matmul M dim
        win = x_ref[b, pl.ds(r0, TH + 2), :]                         # (TH+2, Cwp)
        rows.append(jnp.concatenate(
            [win[0:TH, :], win[1:TH + 1, :], win[2:TH + 2, :]], axis=-1))  # (TH, 3*Cwp)
    lhs = rows[0] if NB == 1 else jnp.concatenate(rows, axis=0)      # (NB*TH, 3*Cwp)

    # One fused-K MXU matmul with f32 accumulation.
    acc = jnp.dot(lhs, w_ref[...], preferred_element_type=jnp.float32)  # (NB*TH, WCp)

    # Folded BN bias + leaky_relu(0.01) epilogue in f32 on the VPU.
    y = acc + b_ref[...]
    y = jnp.where(y > 0, y, slope * y)

    # Accumulator layout == output block layout: straight lane-dense store.
    o_ref[...] = y.reshape(NB, TH, y.shape[-1]).astype(o_ref.dtype)


def conv_bn_relu(x_nchw, weight, gamma, beta, running_mean, running_var,
                 eps=1e-5, slope=0.01, out_dtype=jnp.bfloat16,
                 tile_h=None, max_m=256):
    """x_nchw: (N, Cin, H, W); weight: (Cout, Cin, 3, 3) — PyTorch conventions."""
    N, Cin, H, W = x_nchw.shape
    Cout = weight.shape[0]

    # ---- lane / row padding so tiles are (sublane, 128)-aligned ----
    Cw = (W + 2) * Cin
    Cwp = _round_up(Cw, 128)                      # input lane dim
    cout_step = 128 // math.gcd(W, 128)
    Cout_p = _round_up(Cout, cout_step)           # W * Cout_p % 128 == 0
    WCp = W * Cout_p                              # output lane dim

    Hp = _round_up(H, 16)                         # bf16 sublane packing
    if tile_h is None:
        TH = 16
        for cand in range(16, min(Hp, max_m) + 1, 16):
            if Hp % cand == 0:
                TH = cand
    else:
        TH = int(tile_h)
        assert TH % 16 == 0 and Hp % TH == 0, (TH, Hp)
    HT = Hp // TH

    # Pack batches into M while M = NB*TH stays <= max_m.
    NB = 1
    for cand in range(1, N + 1):
        if N % cand == 0 and cand * TH <= max_m:
            NB = cand
    NG = N // NB

    # ---- fold BN (eval semantics) into conv weights + bias ----
    scale = (gamma / jnp.sqrt(running_var + eps)).astype(jnp.float32)   # (Cout,)
    bias = (beta - running_mean * scale).astype(jnp.float32)            # (Cout,)
    w_hwio = jnp.transpose(weight, (2, 3, 1, 0)).astype(jnp.float32)    # (3,3,Cin,Cout)
    w_hwio = w_hwio * scale[None, None, None, :]
    if Cout_p > Cout:
        w_hwio = jnp.pad(w_hwio, ((0, 0), (0, 0), (0, 0), (0, Cout_p - Cout)))
        bias = jnp.pad(bias, (0, Cout_p - Cout))

    # ---- kh-fused W-Toeplitz weight: (3*Cwp, W*Cout_p) ----
    # sel[kw, v, w] = 1 iff v == w + kw
    sel = jnp.stack([jnp.eye(W + 2, W, k=-kw, dtype=jnp.float32) for kw in range(3)])
    w_toe = jnp.einsum('kvw,hkio->hviwo', sel, w_hwio)       # (3, W+2, Cin, W, Cout_p)
    w_toe = w_toe.reshape(3, Cw, WCp)
    w_toe = jnp.pad(w_toe, ((0, 0), (0, Cwp - Cw), (0, 0)))  # pad K rows to Cwp
    w_fused = w_toe.reshape(3 * Cwp, WCp).astype(jnp.bfloat16)
    bias_lanes = jnp.tile(bias, W).reshape(1, WCp)           # f32, col index = w*Cout_p + o

    # ---- input: NCHW -> zero-padded, lane-flattened rows (no overlap expansion) ----
    x_nhwc = jnp.transpose(x_nchw, (0, 2, 3, 1))                       # (N, H, W, Cin)
    x_pad = jnp.pad(x_nhwc, ((0, 0), (1, 1 + (Hp - H)), (1, 1), (0, 0)))
    x_flat = x_pad.reshape(N, Hp + 2, Cw)
    x_flat = jnp.pad(x_flat, ((0, 0), (0, 0), (0, Cwp - Cw))).astype(jnp.bfloat16)

    kernel = functools.partial(_conv_bn_lrelu_kernel, NB=NB, TH=TH, HT=HT, slope=slope)

    out_bytes = jnp.dtype(out_dtype).itemsize
    est = (2 * NB * (Hp + 2) * Cwp * 2 + 3 * Cwp * WCp * 2 + WCp * 4
           + 2 * NB * TH * WCp * out_bytes + 2 * NB * TH * 3 * Cwp * 2)
    vmem_limit = int(min(32 * 2 ** 20, max(16 * 2 ** 20, 4 * est)))

    def run(single_buffer_consts):
        def const_spec(shape):
            kw = {}
            if single_buffer_consts and hasattr(pl, "Buffered"):
                kw["pipeline_mode"] = pl.Buffered(1)   # grid-invariant block: no double buffer
            return pl.BlockSpec(shape, lambda g, t: (0,) * len(shape), **kw)

        return pl.pallas_call(
            kernel,
            out_shape=jax.ShapeDtypeStruct((N, Hp, WCp), out_dtype),
            grid_spec=pltpu.PrefetchScalarGridSpec(
                num_scalar_prefetch=0,
                grid=(NG, HT),
                in_specs=[
                    pl.BlockSpec((NB, Hp + 2, Cwp), lambda g, t: (g, 0, 0)),
                    const_spec((3 * Cwp, WCp)),
                    const_spec((1, WCp)),
                ],
                out_specs=pl.BlockSpec((NB, TH, WCp), lambda g, t: (g, t, 0)),
            ),
            compiler_params=pltpu.CompilerParams(
                dimension_semantics=("parallel", "parallel"),
                vmem_limit_bytes=vmem_limit),
        )(x_flat, w_fused, bias_lanes)

    try:
        out = run(True)
    except Exception:
        # Fallback for jax builds that reject pipeline_mode=pl.Buffered(1).
        out = run(False)

    # (N, Hp, W*Cout_p) -> (N, H, W, Cout) -> NCHW
    out = out.reshape(N, Hp, W, Cout_p)[:, :H, :, :Cout]
    return jnp.transpose(out, (0, 3, 1, 2))


def _reference(x_nchw, weight, gamma, beta, running_mean, running_var,
               eps=1e-5, slope=0.01):
    y = lax.conv_general_dilated(
        x_nchw.astype(jnp.float32), weight.astype(jnp.float32),
        window_strides=(1, 1), padding=((1, 1), (1, 1)),
        dimension_numbers=("NCHW", "OIHW", "NCHW"))
    scale = gamma / jnp.sqrt(running_var + eps)
    bias = beta - running_mean * scale
    y = y * scale[None, :, None, None] + bias[None, :, None, None]
    return jnp.where(y > 0, y, slope * y)


if __name__ == "__main__":
    # ConvBnReLU(in_channels=4, out_channels=8, kernel_size=3, stride=1, pad=1)
    N, Cin, H, W, Cout = 2, 4, 16, 16, 8

    key = jax.random.PRNGKey(0)
    kx, kw, kg, kb, km, kv = jax.random.split(key, 6)

    x = jax.random.normal(kx, (N, Cin, H, W), dtype=jnp.float32)
    weight = jax.random.normal(kw, (Cout, Cin, 3, 3), dtype=jnp.float32) * 0.1
    gamma = 1.0 + 0.1 * jax.random.normal(kg, (Cout,), dtype=jnp.float32)
    beta = 0.1 * jax.random.normal(kb, (Cout,), dtype=jnp.float32)
    running_mean = 0.1 * jax.random.normal(km, (Cout,), dtype=jnp.float32)
    running_var = jnp.abs(1.0 + 0.1 * jax.random.normal(kv, (Cout,), dtype=jnp.float32))

    out = conv_bn_relu(x, weight, gamma, beta, running_mean, running_var)
    out = jax.block_until_ready(out)

    ref = _reference(x, weight, gamma, beta, running_mean, running_var)
    assert out.shape == (N, Cout, H, W)
    out_f32 = out.astype(jnp.float32)
    # bf16 MXU operands + bf16 output -> tolerance sized for bf16 rounding.
    max_err = float(jnp.max(jnp.abs(out_f32 - ref)))
    assert jnp.allclose(out_f32, ref, atol=4e-2, rtol=4e-2), max_err

    print("KERNEL_OK")
</pallas_src>

<mosaic_0001>
module attributes {stable_mosaic.version = 11 : i64} {
  func.func @_conv_bn_lrelu_kernel(%arg0: i32, %arg1: i32, %arg2: memref<2x18x128xbf16, #tpu.memory_space<vmem>>, %arg3: memref<384x128xbf16, #tpu.memory_space<vmem>>, %arg4: memref<1x128xf32, #tpu.memory_space<vmem>>, %arg5: memref<2x16x128xbf16, #tpu.memory_space<vmem>>) attributes {dimension_semantics = [#tpu.dimension_semantics<parallel>, #tpu.dimension_semantics<parallel>], iteration_bounds = array<i64: 1, 1>, scalar_prefetch = 0 : i64, scratch_operands = 0 : i64, tpu.core_type = #tpu.core_type<tc>, window_params = [{transform_indices = @transform_0, window_bounds = array<i64: 2, 18, 128>}, {pipeline_mode = #tpu.pipeline_mode<synchronous>, transform_indices = @transform_1, window_bounds = array<i64: 384, 128>}, {pipeline_mode = #tpu.pipeline_mode<synchronous>, transform_indices = @transform_2, window_bounds = array<i64: 1, 128>}, {transform_indices = @transform_3, window_bounds = array<i64: 2, 16, 128>}]} {
    %c0 = arith.constant 0 : index
    %c0_0 = arith.constant 0 : index
    %c0_1 = arith.constant 0 : index
    %0 = vector.load %arg2[%c0, %c0_0, %c0_1] : memref<2x18x128xbf16, #tpu.memory_space<vmem>>, vector<1x18x128xbf16>
    %1 = vector.shape_cast %0 : vector<1x18x128xbf16> to vector<18x128xbf16>
    %2 = vector.extract_strided_slice %1 {offsets = [0, 0], sizes = [16, 128], strides = [1, 1]} : vector<18x128xbf16> to vector<16x128xbf16>
    %3 = vector.extract_strided_slice %1 {offsets = [1, 0], sizes = [16, 128], strides = [1, 1]} : vector<18x128xbf16> to vector<16x128xbf16>
    %4 = vector.extract_strided_slice %1 {offsets = [2, 0], sizes = [16, 128], strides = [1, 1]} : vector<18x128xbf16> to vector<16x128xbf16>
    %5 = tpu.concatenate %2, %3, %4 in 1 : vector<16x128xbf16>, vector<16x128xbf16>, vector<16x128xbf16> -> vector<16x384xbf16>
    %c1 = arith.constant 1 : index
    %c0_2 = arith.constant 0 : index
    %c0_3 = arith.constant 0 : index
    %6 = vector.load %arg2[%c1, %c0_2, %c0_3] : memref<2x18x128xbf16, #tpu.memory_space<vmem>>, vector<1x18x128xbf16>
    %7 = vector.shape_cast %6 : vector<1x18x128xbf16> to vector<18x128xbf16>
    %8 = vector.extract_strided_slice %7 {offsets = [0, 0], sizes = [16, 128], strides = [1, 1]} : vector<18x128xbf16> to vector<16x128xbf16>
    %9 = vector.extract_strided_slice %7 {offsets = [1, 0], sizes = [16, 128], strides = [1, 1]} : vector<18x128xbf16> to vector<16x128xbf16>
    %10 = vector.extract_strided_slice %7 {offsets = [2, 0], sizes = [16, 128], strides = [1, 1]} : vector<18x128xbf16> to vector<16x128xbf16>
    %11 = tpu.concatenate %8, %9, %10 in 1 : vector<16x128xbf16>, vector<16x128xbf16>, vector<16x128xbf16> -> vector<16x384xbf16>
    %12 = tpu.concatenate %5, %11 in 0 : vector<16x384xbf16>, vector<16x384xbf16> -> vector<32x384xbf16>
    %c0_4 = arith.constant 0 : index
    %c0_5 = arith.constant 0 : index
    %13 = vector.load %arg3[%c0_4, %c0_5] : memref<384x128xbf16, #tpu.memory_space<vmem>>, vector<384x128xbf16>
    %cst = arith.constant dense<0.000000e+00> : vector<32x128xf32>
    %14 = tpu.matmul %12, %13, %cst {dimension_numbers = #tpu.dot_dimension_numbers<[1], [0], [0], [1], [0, 0, 1, 1], [], []>} : vector<32x384xbf16>, vector<384x128xbf16>, vector<32x128xf32> -> vector<32x128xf32>
    %c0_6 = arith.constant 0 : index
    %c0_7 = arith.constant 0 : index
    %15 = vector.load %arg4[%c0_6, %c0_7] : memref<1x128xf32, #tpu.memory_space<vmem>>, vector<1x128xf32>
    %16 = vector.broadcast %15 : vector<1x128xf32> to vector<32x128xf32>
    %17 = arith.addf %14, %16 : vector<32x128xf32>
    %cst_8 = arith.constant 0.000000e+00 : f32
    %18 = vector.broadcast %cst_8 : f32 to vector<32x128xf32>
    %19 = arith.cmpf ogt, %17, %18 : vector<32x128xf32>
    %cst_9 = arith.constant 0.00999999977 : f32
    %20 = vector.broadcast %cst_9 : f32 to vector<32x128xf32>
    %21 = arith.mulf %20, %17 : vector<32x128xf32>
    %22 = arith.select %19, %17, %21 : vector<32x128xi1>, vector<32x128xf32>
    %23 = vector.shape_cast %22 : vector<32x128xf32> to vector<2x16x128xf32>
    %24 = arith.truncf %23 : vector<2x16x128xf32> to vector<2x16x128xbf16>
    %c0_10 = arith.constant 0 : index
    %c0_11 = arith.constant 0 : index
    %c0_12 = arith.constant 0 : index
    %25 = vector.load %arg5[%c0_10, %c0_11, %c0_12] : memref<2x16x128xbf16, #tpu.memory_space<vmem>>, vector<2x16x128xbf16>
    tpu.vector_store %arg5[%c0_10, %c0_11, %c0_12], %24 {strides = array<i32>} : memref<2x16x128xbf16, #tpu.memory_space<vmem>>, vector<2x16x128xbf16>,
    return
  }
  func.func @transform_0(%arg0: i32, %arg1: i32) -> (i32, i32, i32) {
    %c0_i32 = arith.constant 0 : i32
    %c0_i32_0 = arith.constant 0 : i32
    %c0_i32_1 = arith.constant 0 : i32
    return %arg0, %c0_i32, %c0_i32_0 : i32, i32, i32
  }
  func.func @transform_1(%arg0: i32, %arg1: i32) -> (i32, i32) {
    %c0_i32 = arith.constant 0 : i32
    %c0_i32_0 = arith.constant 0 : i32
    %c0_i32_1 = arith.constant 0 : i32
    return %c0_i32, %c0_i32_0 : i32, i32
  }
  func.func @transform_2(%arg0: i32, %arg1: i32) -> (i32, i32) {
    %c0_i32 = arith.constant 0 : i32
    %c0_i32_0 = arith.constant 0 : i32
    %c0_i32_1 = arith.constant 0 : i32
    return %c0_i32, %c0_i32_0 : i32, i32
  }
  func.func @transform_3(%arg0: i32, %arg1: i32) -> (i32, i32, i32) {
    %c0_i32 = arith.constant 0 : i32
    %c0_i32_0 = arith.constant 0 : i32
    return %arg0, %arg1, %c0_i32 : i32, i32, i32
  }
}

module attributes {stable_mosaic.version = 11 : i64} {
  func.func @_conv_bn_lrelu_kernel(%arg0: i32, %arg1: i32, %arg2: memref<2x18x128xbf16, #tpu.memory_space<vmem>>, %arg3: memref<384x128xbf16, #tpu.memory_space<vmem>>, %arg4: memref<1x128xf32, #tpu.memory_space<vmem>>, %arg5: memref<2x16x128xbf16, #tpu.memory_space<vmem>>) attributes {dimension_semantics = [#tpu.dimension_semantics<parallel>, #tpu.dimension_semantics<parallel>], iteration_bounds = array<i64: 1, 1>, scalar_prefetch = 0 : i64, scratch_operands = 0 : i64, tpu.core_type = #tpu.core_type<tc>, window_params = [{transform_indices = @transform_0, window_bounds = array<i64: 2, 18, 128>}, {pipeline_mode = #tpu.pipeline_mode<synchronous>, transform_indices = @transform_1, window_bounds = array<i64: 384, 128>}, {pipeline_mode = #tpu.pipeline_mode<synchronous>, transform_indices = @transform_2, window_bounds = array<i64: 1, 128>}, {transform_indices = @transform_3, window_bounds = array<i64: 2, 16, 128>}]} {
    %c0 = arith.constant 0 : index
    %c0_0 = arith.constant 0 : index
    %c0_1 = arith.constant 0 : index
    %0 = vector.load %arg2[%c0, %c0_0, %c0_1] : memref<2x18x128xbf16, #tpu.memory_space<vmem>>, vector<1x18x128xbf16>
    %1 = vector.shape_cast %0 : vector<1x18x128xbf16> to vector<18x128xbf16>
    %2 = vector.extract_strided_slice %1 {offsets = [0, 0], sizes = [16, 128], strides = [1, 1]} : vector<18x128xbf16> to vector<16x128xbf16>
    %3 = vector.extract_strided_slice %1 {offsets = [1, 0], sizes = [16, 128], strides = [1, 1]} : vector<18x128xbf16> to vector<16x128xbf16>
    %4 = vector.extract_strided_slice %1 {offsets = [2, 0], sizes = [16, 128], strides = [1, 1]} : vector<18x128xbf16> to vector<16x128xbf16>
    %5 = tpu.concatenate %2, %3, %4 in 1 : vector<16x128xbf16>, vector<16x128xbf16>, vector<16x128xbf16> -> vector<16x384xbf16>
    %c1 = arith.constant 1 : index
    %c0_2 = arith.constant 0 : index
    %c0_3 = arith.constant 0 : index
    %6 = vector.load %arg2[%c1, %c0_2, %c0_3] : memref<2x18x128xbf16, #tpu.memory_space<vmem>>, vector<1x18x128xbf16>
    %7 = vector.shape_cast %6 : vector<1x18x128xbf16> to vector<18x128xbf16>
    %8 = vector.extract_strided_slice %7 {offsets = [0, 0], sizes = [16, 128], strides = [1, 1]} : vector<18x128xbf16> to vector<16x128xbf16>
    %9 = vector.extract_strided_slice %7 {offsets = [1, 0], sizes = [16, 128], strides = [1, 1]} : vector<18x128xbf16> to vector<16x128xbf16>
    %10 = vector.extract_strided_slice %7 {offsets = [2, 0], sizes = [16, 128], strides = [1, 1]} : vector<18x128xbf16> to vector<16x128xbf16>
    %11 = tpu.concatenate %8, %9, %10 in 1 : vector<16x128xbf16>, vector<16x128xbf16>, vector<16x128xbf16> -> vector<16x384xbf16>
    %12 = tpu.concatenate %5, %11 in 0 : vector<16x384xbf16>, vector<16x384xbf16> -> vector<32x384xbf16>
    %c0_4 = arith.constant 0 : index
    %c0_5 = arith.constant 0 : index
    %13 = vector.load %arg3[%c0_4, %c0_5] : memref<384x128xbf16, #tpu.memory_space<vmem>>, vector<384x128xbf16>
    %cst = arith.constant dense<0.000000e+00> : vector<32x128xf32>
    %14 = tpu.matmul %12, %13, %cst {dimension_numbers = #tpu.dot_dimension_numbers<[1], [0], [0], [1], [0, 0, 1, 1], [], []>} : vector<32x384xbf16>, vector<384x128xbf16>, vector<32x128xf32> -> vector<32x128xf32>
    %c0_6 = arith.constant 0 : index
    %c0_7 = arith.constant 0 : index
    %15 = vector.load %arg4[%c0_6, %c0_7] : memref<1x128xf32, #tpu.memory_space<vmem>>, vector<1x128xf32>
    %16 = vector.broadcast %15 : vector<1x128xf32> to vector<32x128xf32>
    %17 = arith.addf %14, %16 : vector<32x128xf32>
    %cst_8 = arith.constant 0.000000e+00 : f32
    %18 = vector.broadcast %cst_8 : f32 to vector<32x128xf32>
    %19 = arith.cmpf ogt, %17, %18 : vector<32x128xf32>
    %cst_9 = arith.constant 0.00999999977 : f32
    %20 = vector.broadcast %cst_9 : f32 to vector<32x128xf32>
    %21 = arith.mulf %20, %17 : vector<32x128xf32>
    %22 = arith.select %19, %17, %21 : vector<32x128xi1>, vector<32x128xf32>
    %23 = vector.shape_cast %22 : vector<32x128xf32> to vector<2x16x128xf32>
    %24 = arith.truncf %23 : vector<2x16x128xf32> to vector<2x16x128xbf16>
    %c0_10 = arith.constant 0 : index
    %c0_11 = arith.constant 0 : index
    %c0_12 = arith.constant 0 : index
    %25 = vector.load %arg5[%c0_10, %c0_11, %c0_12] : memref<2x16x128xbf16, #tpu.memory_space<vmem>>, vector<2x16x128xbf16>
    tpu.vector_store %arg5[%c0_10, %c0_11, %c0_12], %24 {strides = array<i32>} : memref<2x16x128xbf16, #tpu.memory_space<vmem>>, vector<2x16x128xbf16>,
    return
  }
  func.func @transform_0(%arg0: i32, %arg1: i32) -> (i32, i32, i32) {
    %c0_i32 = arith.constant 0 : i32
    %c0_i32_0 = arith.constant 0 : i32
    %c0_i32_1 = arith.constant 0 : i32
    return %arg0, %c0_i32, %c0_i32_0 : i32, i32, i32
  }
  func.func @transform_1(%arg0: i32, %arg1: i32) -> (i32, i32) {
    %c0_i32 = arith.constant 0 : i32
    %c0_i32_0 = arith.constant 0 : i32
    %c0_i32_1 = arith.constant 0 : i32
    return %c0_i32, %c0_i32_0 : i32, i32
  }
  func.func @transform_2(%arg0: i32, %arg1: i32) -> (i32, i32) {
    %c0_i32 = arith.constant 0 : i32
    %c0_i32_0 = arith.constant 0 : i32
    %c0_i32_1 = arith.constant 0 : i32
    return %c0_i32, %c0_i32_0 : i32, i32
  }
  func.func @transform_3(%arg0: i32, %arg1: i32) -> (i32, i32, i32) {
    %c0_i32 = arith.constant 0 : i32
    %c0_i32_0 = arith.constant 0 : i32
    return %arg0, %arg1, %c0_i32 : i32, i32, i32
  }
}

</mosaic_0001>

<llo_original>
// kernel: tpu_custom_call.1
$region0: #{tpu_custom_call.1}
  #allocation0 [shape = 'u32[]', space=smem, size = 0x4, offset = 0x4, fixed_abs, tag = 'smem constant byte address 0x4 - core index']
  #allocation1 [shape = 'u32[144,128]{1,0:T(1,128)}', space=vmem, size = 0x12000, scoped, tag = 'internal scratch']
  %s0 = inlined_call_operand.vmem [shape: bf16[2,18,128], index: 0, kind: input, shape index: {}]
  %s1 = inlined_call_operand.hbm [shape: bf16[384,128], index: 1, kind: input, shape index: {}]
  %s2 = inlined_call_operand.vmem [shape: f32[1,128], index: 2, kind: input, shape index: {}]
  %s3 = inlined_call_operand.hbm [shape: bf16[2,16,128], index: 3, kind: output, shape index: {}]
  %s4 = sld [smem:[#allocation0]]
  $region26: #{tpu_custom_call.1} parent=0
    _
  %s6 = ssub.s32 1, %s4
  %s7 = scalar_select 0, %s6, %s4
  $region1: #{tpu_custom_call.1} parent=0
    #allocation2 [shape = 'u8[98304]{0}', space=vmem, size = 0x18000, scoped, tag = 'input window, operand 1, single buffered']
    #allocation3 [shape = 's32[1]{0}', space=sflag, size = 0x4, scoped, tag = 'scoped memory for tpu_custom_call.1']
    #allocation4 [shape = 's32[1]{0}', space=sflag, size = 0x4, scoped, tag = 'scoped memory for tpu_custom_call.1']
    #allocation5 [shape = 'u8[8192]{0}', space=vmem, size = 0x2000, scoped, tag = 'output window, operand 0, single buffered']
    %8 = vsyncpa [#allocation3], 0
    %9 = vsyncpa [#allocation4], 0
    // Predicated region
    $region2: #{tpu_custom_call.1} parent=1 // pred_check
      _
    $region3: #{tpu_custom_call.1} parent=1 // pred_check_branch
      %11 = sbr.rel (0) target = $region5
    $region4: #{tpu_custom_call.1} parent=1 // pred_region
      _
    $region5: #{tpu_custom_call.1} parent=1 // pred_fallthru
      _
    // Predicated region
    $region6: #{tpu_custom_call.1} parent=1 // pred_check
      _
    $region7: #{tpu_custom_call.1} parent=1 // pred_check_branch
      %13 = sbr.rel (0) target = $region9
    $region8: #{tpu_custom_call.1} parent=1 // pred_region
      %s15 = ssub.s32 3072, 3072
      %16 = vsyncadd [#allocation3], %s15
      %s17 = sshll.u32 [#allocation2], 4
      %s18 = int_to_ptr.vmem [resolvable:$true] %s17
      %23 = dma.hbm_to_vmem [thread:$0]  %s1, 3072, %s18, [#allocation3], 64, 64, 4
    $region9: #{tpu_custom_call.1} parent=1 // pred_fallthru
      _
    // Predicated region
    $region10: #{tpu_custom_call.1} parent=1 // pred_check
      _
    $region11: #{tpu_custom_call.1} parent=1 // pred_check_branch
      %25 = sbr.rel (0) target = $region13
    $region12: #{tpu_custom_call.1} parent=1 // pred_region
      _
    $region13: #{tpu_custom_call.1} parent=1 // pred_fallthru
      _
    // Predicated region
    $region14: #{tpu_custom_call.1} parent=1 // pred_check
      _
    $region15: #{tpu_custom_call.1} parent=1 // pred_check_branch
      %27 = sbr.rel (0) target = $region17
    $region16: #{tpu_custom_call.1} parent=1 // pred_region
      %28 = dma.done [#allocation3], 3072
    $region17: #{tpu_custom_call.1} parent=1 // pred_fallthru
      _
    %v30 = vld [vmem:[%s0] sm:$0xf]
    %v31 = vld [vmem:[%s0 + $0x4] sm:$0xf]
    %v32 = vld [vmem:[%s0 + $0x8] sm:$0x1]
    %v35 = vunpack.c.l.b16 %v30
    %v36 = vunpack.c.l.b16 %v31
    %v37 = vpack.c.b16 %v36, %v35
    %v40 = vunpack.c.l.b16 %v32
    %v41 = vpack.c.b16 %v40, %v40
    %vm42 = vsmask.f32 7424
    %v44 = vshrl.u32 %v37, 16
    %v46 = vshll.u32 %v37, 16
    %v48 = vrot.slane %v46, 1
    %v49 = vor.u32 %v44, %v48
    %v51 = vshll.u32 %v41, 16
    %v53 = vrot.slane %v51, 1
    %v54 = vsel %vm42, %v49, %v53
    %vm56 = vcmask 1046528
    %v57 = vrot.slane %v37, 1
    %v58 = vrot.slane %v41, 1
    %v59 = vsel %vm56, %v57, %v58
    %s61 = scalar_lea.vmem %s0, 12
    %v62 = vld [vmem:[%s61] sm:$0xf]
    %v63 = vld [vmem:[%s61 + $0x4] sm:$0xf]
    %v64 = vld [vmem:[%s61 + $0x8] sm:$0x1]
    %v67 = vunpack.c.l.b16 %v62
    %v68 = vunpack.c.l.b16 %v63
    %v69 = vpack.c.b16 %v68, %v67
    %v72 = vunpack.c.l.b16 %v64
    %v73 = vpack.c.b16 %v72, %v72
    %v75 = vshrl.u32 %v69, 16
    %v77 = vshll.u32 %v69, 16
    %v79 = vrot.slane %v77, 1
    %v80 = vor.u32 %v75, %v79
    %v82 = vshll.u32 %v73, 16
    %v84 = vrot.slane %v82, 1
    %v85 = vsel %vm42, %v80, %v84
    %v87 = vrot.slane %v69, 1
    %v88 = vrot.slane %v73, 1
    %v89 = vsel %vm56, %v87, %v88
    %v91 = vld [vmem:[#allocation2] sm:$0xf]
    %v92 = vld [vmem:[#allocation2 + $0x4] sm:$0xf]
    %v93 = vld [vmem:[#allocation2 + $0x8] sm:$0xf]
    %v94 = vld [vmem:[#allocation2 + $0xc] sm:$0xf]
    %v95 = vld [vmem:[#allocation2 + $0x10] sm:$0xf]
    %v96 = vld [vmem:[#allocation2 + $0x14] sm:$0xf]
    %v97 = vld [vmem:[#allocation2 + $0x18] sm:$0xf]
    %v98 = vld [vmem:[#allocation2 + $0x1c] sm:$0xf]
    %v99 = vld [vmem:[#allocation2 + $0x20] sm:$0xf]
    %v100 = vld [vmem:[#allocation2 + $0x24] sm:$0xf]
    %v101 = vld [vmem:[#allocation2 + $0x28] sm:$0xf]
    %v102 = vld [vmem:[#allocation2 + $0x2c] sm:$0xf]
    %v103 = vld [vmem:[#allocation2 + $0x30] sm:$0xf]
    %v104 = vld [vmem:[#allocation2 + $0x34] sm:$0xf]
    %v105 = vld [vmem:[#allocation2 + $0x38] sm:$0xf]
    %v106 = vld [vmem:[#allocation2 + $0x3c] sm:$0xf]
    %v107 = vld [vmem:[#allocation2 + $0x40] sm:$0xf]
    %v108 = vld [vmem:[#allocation2 + $0x44] sm:$0xf]
    %v109 = vld [vmem:[#allocation2 + $0x48] sm:$0xf]
    %v110 = vld [vmem:[#allocation2 + $0x4c] sm:$0xf]
    %v111 = vld [vmem:[#allocation2 + $0x50] sm:$0xf]
    %v112 = vld [vmem:[#allocation2 + $0x54] sm:$0xf]
    %v113 = vld [vmem:[#allocation2 + $0x58] sm:$0xf]
    %v114 = vld [vmem:[#allocation2 + $0x5c] sm:$0xf]
    %v115 = vld [vmem:[#allocation2 + $0x60] sm:$0xf]
    %v116 = vld [vmem:[#allocation2 + $0x64] sm:$0xf]
    %v117 = vld [vmem:[#allocation2 + $0x68] sm:$0xf]
    %v118 = vld [vmem:[#allocation2 + $0x6c] sm:$0xf]
    %v119 = vld [vmem:[#allocation2 + $0x70] sm:$0xf]
    %v120 = vld [vmem:[#allocation2 + $0x74] sm:$0xf]
    %v121 = vld [vmem:[#allocation2 + $0x78] sm:$0xf]
    %v122 = vld [vmem:[#allocation2 + $0x7c] sm:$0xf]
    %v123 = vld [vmem:[#allocation2 + $0x80] sm:$0xf]
    %v124 = vld [vmem:[#allocation2 + $0x84] sm:$0xf]
    %v125 = vld [vmem:[#allocation2 + $0x88] sm:$0xf]
    %v126 = vld [vmem:[#allocation2 + $0x8c] sm:$0xf]
    %v127 = vld [vmem:[#allocation2 + $0x90] sm:$0xf]
    %v128 = vld [vmem:[#allocation2 + $0x94] sm:$0xf]
    %v129 = vld [vmem:[#allocation2 + $0x98] sm:$0xf]
    %v130 = vld [vmem:[#allocation2 + $0x9c] sm:$0xf]
    %v131 = vld [vmem:[#allocation2 + $0xa0] sm:$0xf]
    %v132 = vld [vmem:[#allocation2 + $0xa4] sm:$0xf]
    %v133 = vld [vmem:[#allocation2 + $0xa8] sm:$0xf]
    %v134 = vld [vmem:[#allocation2 + $0xac] sm:$0xf]
    %v135 = vld [vmem:[#allocation2 + $0xb0] sm:$0xf]
    %v136 = vld [vmem:[#allocation2 + $0xb4] sm:$0xf]
    %v137 = vld [vmem:[#allocation2 + $0xb8] sm:$0xf]
    %v138 = vld [vmem:[#allocation2 + $0xbc] sm:$0xf]
    %v139 = vld [vmem:[%s2] sm:$0x1]
    %v141 = vlaneseq
    %v142 = vshrl.u32 %v141, 7
    %v143 = vsub.s32 0, %v142
    %v144 = vrot.slane %v139, %v143
    %v194 = vunpack.c.l.b16 %v91
    %v195 = vunpack.c.l.b16 %v92
    %v196 = vunpack.c.l.b16 %v93
    %v197 = vunpack.c.l.b16 %v94
    %v198 = vunpack.c.l.b16 %v95
    %v199 = vunpack.c.l.b16 %v96
    %v200 = vunpack.c.l.b16 %v97
    %v201 = vunpack.c.l.b16 %v98
    %v202 = vunpack.c.l.b16 %v99
    %v203 = vunpack.c.l.b16 %v100
    %v204 = vunpack.c.l.b16 %v101
    %v205 = vunpack.c.l.b16 %v102
    %v206 = vunpack.c.l.b16 %v103
    %v207 = vunpack.c.l.b16 %v104
    %v208 = vunpack.c.l.b16 %v105
    %v209 = vunpack.c.l.b16 %v106
    %v210 = vunpack.c.l.b16 %v107
    %v211 = vunpack.c.l.b16 %v108
    %v212 = vunpack.c.l.b16 %v109
    %v213 = vunpack.c.l.b16 %v110
    %v214 = vunpack.c.l.b16 %v111
    %v215 = vunpack.c.l.b16 %v112
    %v216 = vunpack.c.l.b16 %v113
    %v217 = vunpack.c.l.b16 %v114
    %v218 = vunpack.c.l.b16 %v115
    %v219 = vunpack.c.l.b16 %v116
    %v220 = vunpack.c.l.b16 %v117
    %v221 = vunpack.c.l.b16 %v118
    %v222 = vunpack.c.l.b16 %v119
    %v223 = vunpack.c.l.b16 %v120
    %v224 = vunpack.c.l.b16 %v121
    %v225 = vunpack.c.l.b16 %v122
    %v226 = vunpack.c.l.b16 %v123
    %v227 = vunpack.c.l.b16 %v124
    %v228 = vunpack.c.l.b16 %v125
    %v229 = vunpack.c.l.b16 %v126
    %v230 = vunpack.c.l.b16 %v127
    %v231 = vunpack.c.l.b16 %v128
    %v232 = vunpack.c.l.b16 %v129
    %v233 = vunpack.c.l.b16 %v130
    %v234 = vunpack.c.l.b16 %v131
    %v235 = vunpack.c.l.b16 %v132
    %v236 = vunpack.c.l.b16 %v133
    %v237 = vunpack.c.l.b16 %v134
    %v238 = vunpack.c.l.b16 %v135
    %v239 = vunpack.c.l.b16 %v136
    %v240 = vunpack.c.l.b16 %v137
    %v241 = vunpack.c.l.b16 %v138
    %v242 = vpack.c.b16 %v195, %v194
    %v243 = vpack.c.b16 %v197, %v196
    %v244 = vpack.c.b16 %v199, %v198
    %v245 = vpack.c.b16 %v201, %v200
    %v246 = vpack.c.b16 %v203, %v202
    %v247 = vpack.c.b16 %v205, %v204
    %v248 = vpack.c.b16 %v207, %v206
    %v249 = vpack.c.b16 %v209, %v208
    %v250 = vpack.c.b16 %v211, %v210
    %v251 = vpack.c.b16 %v213, %v212
    %v252 = vpack.c.b16 %v215, %v214
    %v253 = vpack.c.b16 %v217, %v216
    %v254 = vpack.c.b16 %v219, %v218
    %v255 = vpack.c.b16 %v221, %v220
    %v256 = vpack.c.b16 %v223, %v222
    %v257 = vpack.c.b16 %v225, %v224
    %v258 = vpack.c.b16 %v227, %v226
    %v259 = vpack.c.b16 %v229, %v228
    %v260 = vpack.c.b16 %v231, %v230
    %v261 = vpack.c.b16 %v233, %v232
    %v262 = vpack.c.b16 %v235, %v234
    %v263 = vpack.c.b16 %v237, %v236
    %v264 = vpack.c.b16 %v239, %v238
    %v265 = vpack.c.b16 %v241, %v240
    %290 = vmatprep.subr.bf16.mxu0 0
    %291 = vmatpush1.bf16.msra.mxu0 %v249
    %292 = vmatprep.subr.bf16.mxu0 0
    %293 = vmatpush1.bf16.msra.mxu0 %v248
    %294 = vmatprep.subr.bf16.mxu0 0
    %295 = vmatpush1.bf16.msra.mxu0 %v247
    %296 = vmatprep.subr.bf16.mxu0 0
    %297 = vmatpush1.bf16.msra.mxu0 %v246
    %298 = vmatprep.subr.bf16.mxu0 0
    %299 = vmatpush1.bf16.msra.mxu0 %v245
    %300 = vmatprep.subr.bf16.mxu0 0
    %301 = vmatpush1.bf16.msra.mxu0 %v244
    %302 = vmatprep.subr.bf16.mxu0 0
    %303 = vmatpush1.bf16.msra.mxu0 %v243
    %304 = vmatprep.subr.bf16.mxu0 0
    %305 = vmatpush1.bf16.msra.mxu0 %v242
    %306 = vmatprep.subr.bf16.mxu0 0
    %307 = vmatpush2.bf16.msra.mxu0 %v257
    %308 = vmatprep.subr.bf16.mxu0 0
    %309 = vmatpush2.bf16.msra.mxu0 %v256
    %310 = vmatprep.subr.bf16.mxu0 0
    %311 = vmatpush2.bf16.msra.mxu0 %v255
    %312 = vmatprep.subr.bf16.mxu0 0
    %313 = vmatpush2.bf16.msra.mxu0 %v254
    %314 = vmatprep.subr.bf16.mxu0 0
    %315 = vmatpush2.bf16.msra.mxu0 %v253
    %316 = vmatprep.subr.bf16.mxu0 0
    %317 = vmatpush2.bf16.msra.mxu0 %v252
    %318 = vmatprep.subr.bf16.mxu0 0
    %319 = vmatpush2.bf16.msra.mxu0 %v251
    %320 = vmatprep.subr.bf16.mxu0 0
    %321 = vmatpush2.bf16.msra.mxu0 %v250
    %322 = vmatprep.mubr.bf16.mxu0 %v54
    %323 = vmatmul.mubr.bf16.gmra.mxu0 %v37
    %v324 = vpop.f32.mrf.mxu0
    %v325 = vadd.f32 %v144, %v324
    %v326 = vpop.f32.mrf.mxu0
    %v327 = vpop.f32.mrf.mxu0
    %v328 = vadd.f32 %v144, %v327
    %v329 = vpop.f32.mrf.mxu0
    %330 = vmatprep.mubr.bf16.mxu0 %v85
    %331 = vmatmul.mubr.bf16.gmra.mxu0 %v69
    %v332 = vpop.f32.mrf.mxu0
    %v333 = vadd.f32 %v144, %v332
    %v334 = vpop.f32.mrf.mxu0
    %v335 = vpop.f32.mrf.mxu0
    %v336 = vadd.f32 %v144, %v335
    %v337 = vpop.f32.mrf.mxu0
    %338 = vdwg.mxu0
    %339 = vmatprep.subr.bf16.mxu0 0
    %340 = vmatpush1.bf16.msra.mxu0 %v265
    %341 = vmatprep.subr.bf16.mxu0 0
    %342 = vmatpush1.bf16.msra.mxu0 %v264
    %343 = vmatprep.subr.bf16.mxu0 0
    %344 = vmatpush1.bf16.msra.mxu0 %v263
    %345 = vmatprep.subr.bf16.mxu0 0
    %346 = vmatpush1.bf16.msra.mxu0 %v262
    %347 = vmatprep.subr.bf16.mxu0 0
    %348 = vmatpush1.bf16.msra.mxu0 %v261
    %349 = vmatprep.subr.bf16.mxu0 0
    %350 = vmatpush1.bf16.msra.mxu0 %v260
    %351 = vmatprep.subr.bf16.mxu0 0
    %352 = vmatpush1.bf16.msra.mxu0 %v259
    %353 = vmatprep.subr.bf16.mxu0 0
    %354 = vmatpush1.bf16.msra.mxu0 %v258
    %355 = vmatprep.subr.bf16.mxu0 0
    %356 = vmatpush2.bf16.msra.mxu0 0
    %357 = vmatprep.subr.bf16.mxu0 0
    %358 = vmatpush2.bf16.msra.mxu0 0
    %359 = vmatprep.subr.bf16.mxu0 0
    %360 = vmatpush2.bf16.msra.mxu0 0
    %361 = vmatprep.subr.bf16.mxu0 0
    %362 = vmatpush2.bf16.msra.mxu0 0
    %363 = vmatprep.subr.bf16.mxu0 0
    %364 = vmatpush2.bf16.msra.mxu0 0
    %365 = vmatprep.subr.bf16.mxu0 0
    %366 = vmatpush2.bf16.msra.mxu0 0
    %367 = vmatprep.subr.bf16.mxu0 0
    %368 = vmatpush2.bf16.msra.mxu0 0
    %369 = vmatprep.subr.bf16.mxu0 0
    %370 = vmatpush2.bf16.msra.mxu0 0
    %371 = vmatprep.mubr.bf16.mxu0 0
    %372 = vmatmul.mubr.bf16.gmra.mxu0 %v59
    %v373 = vpop.f32.mrf.mxu0
    %v374 = vadd.f32 %v325, %v373
    %v375 = vpop.f32.mrf.mxu0
    %v376 = vpop.f32.mrf.mxu0
    %v377 = vadd.f32 %v328, %v376
    %v378 = vpop.f32.mrf.mxu0
    %379 = vmatprep.mubr.bf16.mxu0 0
    %380 = vmatmul.mubr.bf16.gmra.mxu0 %v89
    %v381 = vpop.f32.mrf.mxu0
    %v382 = vadd.f32 %v333, %v381
    %v383 = vpop.f32.mrf.mxu0
    %v384 = vpop.f32.mrf.mxu0
    %v385 = vadd.f32 %v336, %v384
    %v386 = vpop.f32.mrf.mxu0
    %387 = vdwg.mxu0
    %vm388 = vcmp.gt.f32.partialorder %v374, 0.0
    %vm389 = vcmp.gt.f32.partialorder %v377, 0.0
    %vm390 = vcmp.gt.f32.partialorder %v382, 0.0
    %vm391 = vcmp.gt.f32.partialorder %v385, 0.0
    %v392 = vmul.f32 %v374, 0.01
    %v393 = vmul.f32 %v377, 0.01
    %v394 = vmul.f32 %v382, 0.01
    %v395 = vmul.f32 %v385, 0.01
    %v396 = vsel %vm388, %v374, %v392
    %v397 = vsel %vm389, %v377, %v393
    %v398 = vsel %vm390, %v382, %v394
    %v399 = vsel %vm391, %v385, %v395
    %v400 = vpack.c.bf16 %v397, %v396
    %v401 = vpack.c.bf16 %v399, %v398
    %v404 = vunpack.c.l.b16 %v400
    %v405 = vunpack.c.h.b16 %v400
    %v406 = vunpack.c.l.b16 %v401
    %v407 = vunpack.c.h.b16 %v401
    %v408 = vpack.c.b16 %v404, %v404
    %v409 = vpack.c.b16 %v405, %v405
    %v410 = vpack.c.b16 %v406, %v406
    %v411 = vpack.c.b16 %v407, %v407
    %416 = vst [vmem:[#allocation5] sm:$0xf] %v408
    %417 = vst [vmem:[#allocation5 + $0x4] sm:$0xf] %v409
    %418 = vst [vmem:[#allocation5 + $0x8] sm:$0xf] %v410
    %419 = vst [vmem:[#allocation5 + $0xc] sm:$0xf] %v411
    // Predicated region
    $region18: #{tpu_custom_call.1} parent=1 // pred_check
      _
    $region19: #{tpu_custom_call.1} parent=1 // pred_check_branch
      %421 = sbr.rel (0) target = $region21
    $region20: #{tpu_custom_call.1} parent=1 // pred_region
      %s423 = ssub.s32 256, 256
      %424 = vsyncadd [#allocation4], %s423
      %s425 = sshll.u32 [#allocation5], 4
      %s426 = int_to_ptr.vmem [resolvable:$true] %s425
      %431 = dma.vmem_to_hbm [thread:$0]  %s426, 256, %s3, [#allocation4], 64, 64, 4
    $region21: #{tpu_custom_call.1} parent=1 // pred_fallthru
      _
    // Predicated region
    $region22: #{tpu_custom_call.1} parent=1 // pred_check
      _
    $region23: #{tpu_custom_call.1} parent=1 // pred_check_branch
      %433 = sbr.rel (0) target = $region25
    $region24: #{tpu_custom_call.1} parent=1 // pred_region
      %434 = dma.done [#allocation4], 256
    $region25: #{tpu_custom_call.1} parent=1 // pred_fallthru
      _
    %435 = vsyncpa [#allocation3], 1
    %436 = vsyncpa [#allocation4], 1

// kernel: tpu_custom_call.1
$region0: #{tpu_custom_call.1}
  #allocation0 [shape = 'u32[]', space=smem, size = 0x4, offset = 0x4, fixed_abs, tag = 'smem constant byte address 0x4 - core index']
  #allocation1 [shape = 'u32[144,128]{1,0:T(1,128)}', space=vmem, size = 0x12000, scoped, tag = 'internal scratch']
  %s0 = inlined_call_operand.vmem [shape: bf16[2,18,128], index: 0, kind: input, shape index: {}]
  %s1 = inlined_call_operand.hbm [shape: bf16[384,128], index: 1, kind: input, shape index: {}]
  %s2 = inlined_call_operand.vmem [shape: f32[1,128], index: 2, kind: input, shape index: {}]
  %s3 = inlined_call_operand.hbm [shape: bf16[2,16,128], index: 3, kind: output, shape index: {}]
  %s4 = sld [smem:[#allocation0]]
  $region26: #{tpu_custom_call.1} parent=0
    _
  %s6 = ssub.s32 1, %s4
  %s7 = scalar_select 0, %s6, %s4
  $region1: #{tpu_custom_call.1} parent=0
    #allocation2 [shape = 'u8[98304]{0}', space=vmem, size = 0x18000, scoped, tag = 'input window, operand 1, single buffered']
    #allocation3 [shape = 's32[1]{0}', space=sflag, size = 0x4, scoped, tag = 'scoped memory for tpu_custom_call.1']
    #allocation4 [shape = 's32[1]{0}', space=sflag, size = 0x4, scoped, tag = 'scoped memory for tpu_custom_call.1']
    #allocation5 [shape = 'u8[8192]{0}', space=vmem, size = 0x2000, scoped, tag = 'output window, operand 0, single buffered']
    %8 = vsyncpa [#allocation3], 0
    %9 = vsyncpa [#allocation4], 0
    // Predicated region
    $region2: #{tpu_custom_call.1} parent=1 // pred_check
      _
    $region3: #{tpu_custom_call.1} parent=1 // pred_check_branch
      %11 = sbr.rel (0) target = $region5
    $region4: #{tpu_custom_call.1} parent=1 // pred_region
      _
    $region5: #{tpu_custom_call.1} parent=1 // pred_fallthru
      _
    // Predicated region
    $region6: #{tpu_custom_call.1} parent=1 // pred_check
      _
    $region7: #{tpu_custom_call.1} parent=1 // pred_check_branch
      %13 = sbr.rel (0) target = $region9
    $region8: #{tpu_custom_call.1} parent=1 // pred_region
      %s15 = ssub.s32 3072, 3072
      %16 = vsyncadd [#allocation3], %s15
      %s17 = sshll.u32 [#allocation2], 4
      %s18 = int_to_ptr.vmem [resolvable:$true] %s17
      %23 = dma.hbm_to_vmem [thread:$0]  %s1, 3072, %s18, [#allocation3], 64, 64, 4
    $region9: #{tpu_custom_call.1} parent=1 // pred_fallthru
      _
    // Predicated region
    $region10: #{tpu_custom_call.1} parent=1 // pred_check
      _
    $region11: #{tpu_custom_call.1} parent=1 // pred_check_branch
      %25 = sbr.rel (0) target = $region13
    $region12: #{tpu_custom_call.1} parent=1 // pred_region
      _
    $region13: #{tpu_custom_call.1} parent=1 // pred_fallthru
      _
    // Predicated region
    $region14: #{tpu_custom_call.1} parent=1 // pred_check
      _
    $region15: #{tpu_custom_call.1} parent=1 // pred_check_branch
      %27 = sbr.rel (0) target = $region17
    $region16: #{tpu_custom_call.1} parent=1 // pred_region
      %28 = dma.done [#allocation3], 3072
    $region17: #{tpu_custom_call.1} parent=1 // pred_fallthru
      _
    %v30 = vld [vmem:[%s0] sm:$0xf]
    %v31 = vld [vmem:[%s0 + $0x4] sm:$0xf]
    %v32 = vld [vmem:[%s0 + $0x8] sm:$0x1]
    %v35 = vunpack.c.l.b16 %v30
    %v36 = vunpack.c.l.b16 %v31
    %v37 = vpack.c.b16 %v36, %v35
    %v40 = vunpack.c.l.b16 %v32
    %v41 = vpack.c.b16 %v40, %v40
    %vm42 = vsmask.f32 7424
    %v44 = vshrl.u32 %v37, 16
    %v46 = vshll.u32 %v37, 16
    %v48 = vrot.slane %v46, 1
    %v49 = vor.u32 %v44, %v48
    %v51 = vshll.u32 %v41, 16
    %v53 = vrot.slane %v51, 1
    %v54 = vsel %vm42, %v49, %v53
    %vm56 = vcmask 1046528
    %v57 = vrot.slane %v37, 1
    %v58 = vrot.slane %v41, 1
    %v59 = vsel %vm56, %v57, %v58
    %s61 = scalar_lea.vmem %s0, 12
    %v62 = vld [vmem:[%s61] sm:$0xf]
    %v63 = vld [vmem:[%s61 + $0x4] sm:$0xf]
    %v64 = vld [vmem:[%s61 + $0x8] sm:$0x1]
    %v67 = vunpack.c.l.b16 %v62
    %v68 = vunpack.c.l.b16 %v63
    %v69 = vpack.c.b16 %v68, %v67
    %v72 = vunpack.c.l.b16 %v64
    %v73 = vpack.c.b16 %v72, %v72
    %v75 = vshrl.u32 %v69, 16
    %v77 = vshll.u32 %v69, 16
    %v79 = vrot.slane %v77, 1
    %v80 = vor.u32 %v75, %v79
    %v82 = vshll.u32 %v73, 16
    %v84 = vrot.slane %v82, 1
    %v85 = vsel %vm42, %v80, %v84
    %v87 = vrot.slane %v69, 1
    %v88 = vrot.slane %v73, 1
    %v89 = vsel %vm56, %v87, %v88
    %v91 = vld [vmem:[#allocation2] sm:$0xf]
    %v92 = vld [vmem:[#allocation2 + $0x4] sm:$0xf]
    %v93 = vld [vmem:[#allocation2 + $0x8] sm:$0xf]
    %v94 = vld [vmem:[#allocation2 + $0xc] sm:$0xf]
    %v95 = vld [vmem:[#allocation2 + $0x10] sm:$0xf]
    %v96 = vld [vmem:[#allocation2 + $0x14] sm:$0xf]
    %v97 = vld [vmem:[#allocation2 + $0x18] sm:$0xf]
    %v98 = vld [vmem:[#allocation2 + $0x1c] sm:$0xf]
    %v99 = vld [vmem:[#allocation2 + $0x20] sm:$0xf]
    %v100 = vld [vmem:[#allocation2 + $0x24] sm:$0xf]
    %v101 = vld [vmem:[#allocation2 + $0x28] sm:$0xf]
    %v102 = vld [vmem:[#allocation2 + $0x2c] sm:$0xf]
    %v103 = vld [vmem:[#allocation2 + $0x30] sm:$0xf]
    %v104 = vld [vmem:[#allocation2 + $0x34] sm:$0xf]
    %v105 = vld [vmem:[#allocation2 + $0x38] sm:$0xf]
    %v106 = vld [vmem:[#allocation2 + $0x3c] sm:$0xf]
    %v107 = vld [vmem:[#allocation2 + $0x40] sm:$0xf]
    %v108 = vld [vmem:[#allocation2 + $0x44] sm:$0xf]
    %v109 = vld [vmem:[#allocation2 + $0x48] sm:$0xf]
    %v110 = vld [vmem:[#allocation2 + $0x4c] sm:$0xf]
    %v111 = vld [vmem:[#allocation2 + $0x50] sm:$0xf]
    %v112 = vld [vmem:[#allocation2 + $0x54] sm:$0xf]
    %v113 = vld [vmem:[#allocation2 + $0x58] sm:$0xf]
    %v114 = vld [vmem:[#allocation2 + $0x5c] sm:$0xf]
    %v115 = vld [vmem:[#allocation2 + $0x60] sm:$0xf]
    %v116 = vld [vmem:[#allocation2 + $0x64] sm:$0xf]
    %v117 = vld [vmem:[#allocation2 + $0x68] sm:$0xf]
    %v118 = vld [vmem:[#allocation2 + $0x6c] sm:$0xf]
    %v119 = vld [vmem:[#allocation2 + $0x70] sm:$0xf]
    %v120 = vld [vmem:[#allocation2 + $0x74] sm:$0xf]
    %v121 = vld [vmem:[#allocation2 + $0x78] sm:$0xf]
    %v122 = vld [vmem:[#allocation2 + $0x7c] sm:$0xf]
    %v123 = vld [vmem:[#allocation2 + $0x80] sm:$0xf]
    %v124 = vld [vmem:[#allocation2 + $0x84] sm:$0xf]
    %v125 = vld [vmem:[#allocation2 + $0x88] sm:$0xf]
    %v126 = vld [vmem:[#allocation2 + $0x8c] sm:$0xf]
    %v127 = vld [vmem:[#allocation2 + $0x90] sm:$0xf]
    %v128 = vld [vmem:[#allocation2 + $0x94] sm:$0xf]
    %v129 = vld [vmem:[#allocation2 + $0x98] sm:$0xf]
    %v130 = vld [vmem:[#allocation2 + $0x9c] sm:$0xf]
    %v131 = vld [vmem:[#allocation2 + $0xa0] sm:$0xf]
    %v132 = vld [vmem:[#allocation2 + $0xa4] sm:$0xf]
    %v133 = vld [vmem:[#allocation2 + $0xa8] sm:$0xf]
    %v134 = vld [vmem:[#allocation2 + $0xac] sm:$0xf]
    %v135 = vld [vmem:[#allocation2 + $0xb0] sm:$0xf]
    %v136 = vld [vmem:[#allocation2 + $0xb4] sm:$0xf]
    %v137 = vld [vmem:[#allocation2 + $0xb8] sm:$0xf]
    %v138 = vld [vmem:[#allocation2 + $0xbc] sm:$0xf]
    %v139 = vld [vmem:[%s2] sm:$0x1]
    %v141 = vlaneseq
    %v142 = vshrl.u32 %v141, 7
    %v143 = vsub.s32 0, %v142
    %v144 = vrot.slane %v139, %v143
    %v194 = vunpack.c.l.b16 %v91
    %v195 = vunpack.c.l.b16 %v92
    %v196 = vunpack.c.l.b16 %v93
    %v197 = vunpack.c.l.b16 %v94
    %v198 = vunpack.c.l.b16 %v95
    %v199 = vunpack.c.l.b16 %v96
    %v200 = vunpack.c.l.b16 %v97
    %v201 = vunpack.c.l.b16 %v98
    %v202 = vunpack.c.l.b16 %v99
    %v203 = vunpack.c.l.b16 %v100
    %v204 = vunpack.c.l.b16 %v101
    %v205 = vunpack.c.l.b16 %v102
    %v206 = vunpack.c.l.b16 %v103
    %v207 = vunpack.c.l.b16 %v104
    %v208 = vunpack.c.l.b16 %v105
    %v209 = vunpack.c.l.b16 %v106
    %v210 = vunpack.c.l.b16 %v107
    %v211 = vunpack.c.l.b16 %v108
    %v212 = vunpack.c.l.b16 %v109
    %v213 = vunpack.c.l.b16 %v110
    %v214 = vunpack.c.l.b16 %v111
    %v215 = vunpack.c.l.b16 %v112
    %v216 = vunpack.c.l.b16 %v113
    %v217 = vunpack.c.l.b16 %v114
    %v218 = vunpack.c.l.b16 %v115
    %v219 = vunpack.c.l.b16 %v116
    %v220 = vunpack.c.l.b16 %v117
    %v221 = vunpack.c.l.b16 %v118
    %v222 = vunpack.c.l.b16 %v119
    %v223 = vunpack.c.l.b16 %v120
    %v224 = vunpack.c.l.b16 %v121
    %v225 = vunpack.c.l.b16 %v122
    %v226 = vunpack.c.l.b16 %v123
    %v227 = vunpack.c.l.b16 %v124
    %v228 = vunpack.c.l.b16 %v125
    %v229 = vunpack.c.l.b16 %v126
    %v230 = vunpack.c.l.b16 %v127
    %v231 = vunpack.c.l.b16 %v128
    %v232 = vunpack.c.l.b16 %v129
    %v233 = vunpack.c.l.b16 %v130
    %v234 = vunpack.c.l.b16 %v131
    %v235 = vunpack.c.l.b16 %v132
    %v236 = vunpack.c.l.b16 %v133
    %v237 = vunpack.c.l.b16 %v134
    %v238 = vunpack.c.l.b16 %v135
    %v239 = vunpack.c.l.b16 %v136
    %v240 = vunpack.c.l.b16 %v137
    %v241 = vunpack.c.l.b16 %v138
    %v242 = vpack.c.b16 %v195, %v194
    %v243 = vpack.c.b16 %v197, %v196
    %v244 = vpack.c.b16 %v199, %v198
    %v245 = vpack.c.b16 %v201, %v200
    %v246 = vpack.c.b16 %v203, %v202
    %v247 = vpack.c.b16 %v205, %v204
    %v248 = vpack.c.b16 %v207, %v206
    %v249 = vpack.c.b16 %v209, %v208
    %v250 = vpack.c.b16 %v211, %v210
    %v251 = vpack.c.b16 %v213, %v212
    %v252 = vpack.c.b16 %v215, %v214
    %v253 = vpack.c.b16 %v217, %v216
    %v254 = vpack.c.b16 %v219, %v218
    %v255 = vpack.c.b16 %v221, %v220
    %v256 = vpack.c.b16 %v223, %v222
    %v257 = vpack.c.b16 %v225, %v224
    %v258 = vpack.c.b16 %v227, %v226
    %v259 = vpack.c.b16 %v229, %v228
    %v260 = vpack.c.b16 %v231, %v230
    %v261 = vpack.c.b16 %v233, %v232
    %v262 = vpack.c.b16 %v235, %v234
    %v263 = vpack.c.b16 %v237, %v236
    %v264 = vpack.c.b16 %v239, %v238
    %v265 = vpack.c.b16 %v241, %v240
    %290 = vmatprep.subr.bf16.mxu0 0
    %291 = vmatpush1.bf16.msra.mxu0 %v249
    %292 = vmatprep.subr.bf16.mxu0 0
    %293 = vmatpush1.bf16.msra.mxu0 %v248
    %294 = vmatprep.subr.bf16.mxu0 0
    %295 = vmatpush1.bf16.msra.mxu0 %v247
    %296 = vmatprep.subr.bf16.mxu0 0
    %297 = vmatpush1.bf16.msra.mxu0 %v246
    %298 = vmatprep.subr.bf16.mxu0 0
    %299 = vmatpush1.bf16.msra.mxu0 %v245
    %300 = vmatprep.subr.bf16.mxu0 0
    %301 = vmatpush1.bf16.msra.mxu0 %v244
    %302 = vmatprep.subr.bf16.mxu0 0
    %303 = vmatpush1.bf16.msra.mxu0 %v243
    %304 = vmatprep.subr.bf16.mxu0 0
    %305 = vmatpush1.bf16.msra.mxu0 %v242
    %306 = vmatprep.subr.bf16.mxu0 0
    %307 = vmatpush2.bf16.msra.mxu0 %v257
    %308 = vmatprep.subr.bf16.mxu0 0
    %309 = vmatpush2.bf16.msra.mxu0 %v256
    %310 = vmatprep.subr.bf16.mxu0 0
    %311 = vmatpush2.bf16.msra.mxu0 %v255
    %312 = vmatprep.subr.bf16.mxu0 0
    %313 = vmatpush2.bf16.msra.mxu0 %v254
    %314 = vmatprep.subr.bf16.mxu0 0
    %315 = vmatpush2.bf16.msra.mxu0 %v253
    %316 = vmatprep.subr.bf16.mxu0 0
    %317 = vmatpush2.bf16.msra.mxu0 %v252
    %318 = vmatprep.subr.bf16.mxu0 0
    %319 = vmatpush2.bf16.msra.mxu0 %v251
    %320 = vmatprep.subr.bf16.mxu0 0
    %321 = vmatpush2.bf16.msra.mxu0 %v250
    %322 = vmatprep.mubr.bf16.mxu0 %v54
    %323 = vmatmul.mubr.bf16.gmra.mxu0 %v37
    %v324 = vpop.f32.mrf.mxu0
    %v325 = vadd.f32 %v144, %v324
    %v326 = vpop.f32.mrf.mxu0
    %v327 = vpop.f32.mrf.mxu0
    %v328 = vadd.f32 %v144, %v327
    %v329 = vpop.f32.mrf.mxu0
    %330 = vmatprep.mubr.bf16.mxu0 %v85
    %331 = vmatmul.mubr.bf16.gmra.mxu0 %v69
    %v332 = vpop.f32.mrf.mxu0
    %v333 = vadd.f32 %v144, %v332
    %v334 = vpop.f32.mrf.mxu0
    %v335 = vpop.f32.mrf.mxu0
    %v336 = vadd.f32 %v144, %v335
    %v337 = vpop.f32.mrf.mxu0
    %338 = vdwg.mxu0
    %339 = vmatprep.subr.bf16.mxu0 0
    %340 = vmatpush1.bf16.msra.mxu0 %v265
    %341 = vmatprep.subr.bf16.mxu0 0
    %342 = vmatpush1.bf16.msra.mxu0 %v264
    %343 = vmatprep.subr.bf16.mxu0 0
    %344 = vmatpush1.bf16.msra.mxu0 %v263
    %345 = vmatprep.subr.bf16.mxu0 0
    %346 = vmatpush1.bf16.msra.mxu0 %v262
    %347 = vmatprep.subr.bf16.mxu0 0
    %348 = vmatpush1.bf16.msra.mxu0 %v261
    %349 = vmatprep.subr.bf16.mxu0 0
    %350 = vmatpush1.bf16.msra.mxu0 %v260
    %351 = vmatprep.subr.bf16.mxu0 0
    %352 = vmatpush1.bf16.msra.mxu0 %v259
    %353 = vmatprep.subr.bf16.mxu0 0
    %354 = vmatpush1.bf16.msra.mxu0 %v258
    %355 = vmatprep.subr.bf16.mxu0 0
    %356 = vmatpush2.bf16.msra.mxu0 0
    %357 = vmatprep.subr.bf16.mxu0 0
    %358 = vmatpush2.bf16.msra.mxu0 0
    %359 = vmatprep.subr.bf16.mxu0 0
    %360 = vmatpush2.bf16.msra.mxu0 0
    %361 = vmatprep.subr.bf16.mxu0 0
    %362 = vmatpush2.bf16.msra.mxu0 0
    %363 = vmatprep.subr.bf16.mxu0 0
    %364 = vmatpush2.bf16.msra.mxu0 0
    %365 = vmatprep.subr.bf16.mxu0 0
    %366 = vmatpush2.bf16.msra.mxu0 0
    %367 = vmatprep.subr.bf16.mxu0 0
    %368 = vmatpush2.bf16.msra.mxu0 0
    %369 = vmatprep.subr.bf16.mxu0 0
    %370 = vmatpush2.bf16.msra.mxu0 0
    %371 = vmatprep.mubr.bf16.mxu0 0
    %372 = vmatmul.mubr.bf16.gmra.mxu0 %v59
    %v373 = vpop.f32.mrf.mxu0
    %v374 = vadd.f32 %v325, %v373
    %v375 = vpop.f32.mrf.mxu0
    %v376 = vpop.f32.mrf.mxu0
    %v377 = vadd.f32 %v328, %v376
    %v378 = vpop.f32.mrf.mxu0
    %379 = vmatprep.mubr.bf16.mxu0 0
    %380 = vmatmul.mubr.bf16.gmra.mxu0 %v89
    %v381 = vpop.f32.mrf.mxu0
    %v382 = vadd.f32 %v333, %v381
    %v383 = vpop.f32.mrf.mxu0
    %v384 = vpop.f32.mrf.mxu0
    %v385 = vadd.f32 %v336, %v384
    %v386 = vpop.f32.mrf.mxu0
    %387 = vdwg.mxu0
    %vm388 = vcmp.gt.f32.partialorder %v374, 0.0
    %vm389 = vcmp.gt.f32.partialorder %v377, 0.0
    %vm390 = vcmp.gt.f32.partialorder %v382, 0.0
    %vm391 = vcmp.gt.f32.partialorder %v385, 0.0
    %v392 = vmul.f32 %v374, 0.01
    %v393 = vmul.f32 %v377, 0.01
    %v394 = vmul.f32 %v382, 0.01
    %v395 = vmul.f32 %v385, 0.01
    %v396 = vsel %vm388, %v374, %v392
    %v397 = vsel %vm389, %v377, %v393
    %v398 = vsel %vm390, %v382, %v394
    %v399 = vsel %vm391, %v385, %v395
    %v400 = vpack.c.bf16 %v397, %v396
    %v401 = vpack.c.bf16 %v399, %v398
    %v404 = vunpack.c.l.b16 %v400
    %v405 = vunpack.c.h.b16 %v400
    %v406 = vunpack.c.l.b16 %v401
    %v407 = vunpack.c.h.b16 %v401
    %v408 = vpack.c.b16 %v404, %v404
    %v409 = vpack.c.b16 %v405, %v405
    %v410 = vpack.c.b16 %v406, %v406
    %v411 = vpack.c.b16 %v407, %v407
    %416 = vst [vmem:[#allocation5] sm:$0xf] %v408
    %417 = vst [vmem:[#allocation5 + $0x4] sm:$0xf] %v409
    %418 = vst [vmem:[#allocation5 + $0x8] sm:$0xf] %v410
    %419 = vst [vmem:[#allocation5 + $0xc] sm:$0xf] %v411
    // Predicated region
    $region18: #{tpu_custom_call.1} parent=1 // pred_check
      _
    $region19: #{tpu_custom_call.1} parent=1 // pred_check_branch
      %421 = sbr.rel (0) target = $region21
    $region20: #{tpu_custom_call.1} parent=1 // pred_region
      %s423 = ssub.s32 256, 256
      %424 = vsyncadd [#allocation4], %s423
      %s425 = sshll.u32 [#allocation5], 4
      %s426 = int_to_ptr.vmem [resolvable:$true] %s425
      %431 = dma.vmem_to_hbm [thread:$0]  %s426, 256, %s3, [#allocation4], 64, 64, 4
    $region21: #{tpu_custom_call.1} parent=1 // pred_fallthru
      _
    // Predicated region
    $region22: #{tpu_custom_call.1} parent=1 // pred_check
      _
    $region23: #{tpu_custom_call.1} parent=1 // pred_check_branch
      %433 = sbr.rel (0) target = $region25
    $region24: #{tpu_custom_call.1} parent=1 // pred_region
      %434 = dma.done [#allocation4], 256
    $region25: #{tpu_custom_call.1} parent=1 // pred_fallthru
      _
    %435 = vsyncpa [#allocation3], 1
    %436 = vsyncpa [#allocation4], 1

</llo_original>
